<compile_context>
chip_gen: v7x
topology: tpu7x:2x2x1
jax: 0.10.0
libtpu: 0.0.40
codegen_flags: <defaults>
</compile_context>

<pallas_src>
import functools

import jax
import jax.numpy as jnp
import numpy as np
from jax.experimental import pallas as pl
from jax.experimental.pallas import tpu as pltpu


def _round_up(x, m):
    return ((x + m - 1) // m) * m


def _dwconv1d_kernel(x_ref, w_ref, b_ref, o_ref, *, padding, length):
    """One grid step: Rt rows (folded batch x channel), all K taps.

    x_ref: (Rt, Lw)   lane-dense input rows; lanes >= `length` are junk (the
                      block is wider than the array) and are zeroed below.
    w_ref: (Rt, K)    one length-K depthwise filter per row
    b_ref: (Rt, 1)    per-row bias
    o_ref: (Rt, Wout) lane-dense output block (HBM writeback clamps to L_out)
    """
    Rt, Lw = x_ref.shape
    K = w_ref.shape[-1]
    Wout = o_ref.shape[-1]

    # Hoisted loads; everything below stays in registers (no VMEM scratch
    # round trip, no masked halo stores).
    xp = x_ref[...].astype(jnp.float32)
    w = w_ref[...].astype(jnp.float32)
    bias = b_ref[...].astype(jnp.float32)

    # Zero the junk lanes past the real signal with a single lane-iota select.
    lane = jax.lax.broadcasted_iota(jnp.int32, (Rt, Lw), dimension=1)
    xz = jnp.where(lane < length, xp, 0.0)

    # Bias folded into the accumulator init (no separate epilogue add).
    acc = jnp.broadcast_to(bias, (Rt, Wout))

    # Unrolled MAC over the K taps.  Tap k needs window x[i + k - padding]; it
    # is produced with one XLU roll of the register-resident signal.  Lanes
    # rolled in from the wrap-around are zeros because Lw >= length + padding,
    # so no per-tap mask is needed and the VALU does only the multiply-add.
    for k in range(K):
        shift = (padding - k) % Lw
        win = pltpu.roll(xz, shift=shift, axis=1) if shift != 0 else xz
        acc = acc + w[:, k:k + 1] * win[:, :Wout]

    o_ref[...] = acc.astype(o_ref.dtype)


def _choose_fold_and_tile(N, C, Wout):
    """Returns (m, r_tile): fold m whole batch elements into the row axis and
    process r_tile rows (sublanes) per grid step."""
    # ~32K-f32 accumulator budget per step (>= 32-64 sublanes at 512 lanes),
    # well past the old 16-vreg cap; modest spill to VMEM is fine.
    sub_budget = max(8, ((32 * 1024) // max(Wout, 1)) // 8 * 8)

    # Fold whole batch elements while the folded row count stays within budget
    # and is sublane-aligned (amortizes step overhead, bigger DMAs).
    m = 1
    for cand in range(min(N, 8), 0, -1):
        if N % cand == 0 and cand * C <= sub_budget and (cand * C) % 8 == 0:
            m = cand
            break

    CB = m * C
    if CB % 8 != 0:
        # Rare fallback (channel count not sublane-aligned): one block spanning
        # all rows is exempt from the (8,128) block-shape rule.
        return N, N * C

    r_tile = 8
    while (r_tile * 2 <= CB and CB % (r_tile * 2) == 0
           and r_tile * 2 <= sub_budget):
        r_tile *= 2
    return m, r_tile


def depthwise_conv1d(x, w, b, *, padding):
    """Depthwise Conv1d. x: (N, C, L); w: (C, K); b: (C,). Returns (N, C, L_out)."""
    N, C, L = x.shape
    K = w.shape[-1]
    L_out = L + 2 * padding - K + 1
    assert L_out > 0, "output length must be positive"

    Wout = _round_up(L_out, 128)        # lane-dense output block (unmasked vst)
    Lw = _round_up(Wout + K - 1, 128)   # working width: covers every tap window
    assert Lw >= L + padding            # roll-wrapped lanes are guaranteed zeros

    m, r_tile = _choose_fold_and_tile(N, C, Wout)
    CB = m * C                           # rows per folded batch group
    num_cblk = CB // r_tile
    grid = (num_cblk, N // m)            # rows OUTER, batch INNER -> w/b DMA'd once

    # Free bitcast reshape: fold (batch, channel) into a single row axis.
    x2 = x.reshape(N * C, L)
    w2 = w if m == 1 else jnp.tile(w, (m, 1))                 # (CB, K)
    b2 = (b if m == 1 else jnp.tile(b, (m,))).reshape(CB, 1)  # (CB, 1)

    kernel = functools.partial(_dwconv1d_kernel, padding=padding, length=L)

    out2 = pl.pallas_call(
        kernel,
        out_shape=jax.ShapeDtypeStruct((N * C, L_out), x.dtype),
        grid_spec=pltpu.PrefetchScalarGridSpec(
            num_scalar_prefetch=0,
            grid=grid,
            in_specs=[
                # Row block of the flattened (N*C, L) input; the lane extent Lw
                # may exceed L (single clamped block; junk lanes masked in-kernel).
                pl.BlockSpec((r_tile, Lw), lambda c, n: (n * num_cblk + c, 0)),
                # Filters / bias: block index depends only on the outer row-block
                # axis, so they are NOT re-fetched across the inner batch axis.
                pl.BlockSpec((r_tile, K), lambda c, n: (c, 0)),
                pl.BlockSpec((r_tile, 1), lambda c, n: (c, 0)),
            ],
            out_specs=pl.BlockSpec((r_tile, Wout),
                                   lambda c, n: (n * num_cblk + c, 0)),
        ),
        compiler_params=pltpu.CompilerParams(
            dimension_semantics=("parallel", "parallel"),
        ),
    )(x2, w2, b2)

    return out2.reshape(N, C, L_out)


def _reference(x, w, b, *, padding):
    # Pure-JAX depthwise conv reference (feature_group_count == C).
    C, K = w.shape
    out = jax.lax.conv_general_dilated(
        x,                                   # (N, C, L)
        w.reshape(C, 1, K),                  # (O=C, I/g=1, K)
        window_strides=(1,),
        padding=[(padding, padding)],
        dimension_numbers=("NCH", "OIH", "NCH"),
        feature_group_count=C,
    )
    return out + b.reshape(1, C, 1)


if __name__ == "__main__":
    N, C, L = 2, 8, 64
    kernel_size, padding = 31, 15

    key = jax.random.PRNGKey(0)
    kx, kw, kb = jax.random.split(key, 3)

    x = jax.random.normal(kx, (N, C, L), dtype=jnp.float32)
    # PyTorch Conv1d default init: U(-1/sqrt(fan_in), +1/sqrt(fan_in)), fan_in = K.
    bound = 1.0 / np.sqrt(1 * kernel_size)
    w = jax.random.uniform(kw, (C, kernel_size), minval=-bound, maxval=bound,
                           dtype=jnp.float32)
    b = jax.random.uniform(kb, (C,), minval=-bound, maxval=bound, dtype=jnp.float32)

    out = depthwise_conv1d(x, w, b, padding=padding)
    out = jax.block_until_ready(out)

    ref = _reference(x, w, b, padding=padding)
    np.testing.assert_allclose(np.asarray(out), np.asarray(ref), rtol=1e-5, atol=1e-5)

    print("KERNEL_OK")
</pallas_src>

<mosaic_0001>
module attributes {stable_mosaic.version = 11 : i64} {
  func.func @_dwconv1d_kernel(%arg0: i32, %arg1: i32, %arg2: memref<16x256xf32, #tpu.memory_space<vmem>>, %arg3: memref<16x31xf32, #tpu.memory_space<vmem>>, %arg4: memref<16x1xf32, #tpu.memory_space<vmem>>, %arg5: memref<16x128xf32, #tpu.memory_space<vmem>>) attributes {dimension_semantics = [#tpu.dimension_semantics<parallel>, #tpu.dimension_semantics<parallel>], iteration_bounds = array<i64: 1, 1>, scalar_prefetch = 0 : i64, scratch_operands = 0 : i64, tpu.core_type = #tpu.core_type<tc>, window_params = [{transform_indices = @transform_0, window_bounds = array<i64: 16, 256>}, {transform_indices = @transform_1, window_bounds = array<i64: 16, 31>}, {transform_indices = @transform_2, window_bounds = array<i64: 16, 1>}, {transform_indices = @transform_3, window_bounds = array<i64: 16, 128>}]} {
    %c0 = arith.constant 0 : index
    %c0_0 = arith.constant 0 : index
    %0 = vector.load %arg2[%c0, %c0_0] : memref<16x256xf32, #tpu.memory_space<vmem>>, vector<16x256xf32>
    %c0_1 = arith.constant 0 : index
    %c0_2 = arith.constant 0 : index
    %1 = vector.load %arg3[%c0_1, %c0_2] : memref<16x31xf32, #tpu.memory_space<vmem>>, vector<16x31xf32>
    %c0_3 = arith.constant 0 : index
    %c0_4 = arith.constant 0 : index
    %2 = vector.load %arg4[%c0_3, %c0_4] : memref<16x1xf32, #tpu.memory_space<vmem>>, vector<16x1xf32>
    %3 = tpu.iota {dimensions = array<i32: 1>} : vector<16x256xi32>
    %c64_i32 = arith.constant 64 : i32
    %4 = vector.broadcast %c64_i32 : i32 to vector<16x256xi32>
    %5 = arith.cmpi slt, %3, %4 : vector<16x256xi32>
    %cst = arith.constant 0.000000e+00 : f32
    %6 = vector.broadcast %cst : f32 to vector<16x256xf32>
    %7 = arith.select %5, %0, %6 : vector<16x256xi1>, vector<16x256xf32>
    %8 = vector.shape_cast %2 : vector<16x1xf32> to vector<16x1xf32>
    %9 = vector.broadcast %8 : vector<16x1xf32> to vector<16x128xf32>
    %c15_i32 = arith.constant 15 : i32
    %10 = tpu.dynamic_rotate %7 by %c15_i32 dim 1 : vector<16x256xf32>, i32 -> vector<16x256xf32>
    %11 = vector.extract_strided_slice %1 {offsets = [0, 0], sizes = [16, 1], strides = [1, 1]} : vector<16x31xf32> to vector<16x1xf32>
    %12 = vector.extract_strided_slice %10 {offsets = [0, 0], sizes = [16, 128], strides = [1, 1]} : vector<16x256xf32> to vector<16x128xf32>
    %13 = vector.broadcast %11 : vector<16x1xf32> to vector<16x128xf32>
    %14 = arith.mulf %13, %12 : vector<16x128xf32>
    %15 = arith.addf %9, %14 : vector<16x128xf32>
    %c14_i32 = arith.constant 14 : i32
    %16 = tpu.dynamic_rotate %7 by %c14_i32 dim 1 : vector<16x256xf32>, i32 -> vector<16x256xf32>
    %17 = vector.extract_strided_slice %1 {offsets = [0, 1], sizes = [16, 1], strides = [1, 1]} : vector<16x31xf32> to vector<16x1xf32>
    %18 = vector.extract_strided_slice %16 {offsets = [0, 0], sizes = [16, 128], strides = [1, 1]} : vector<16x256xf32> to vector<16x128xf32>
    %19 = vector.broadcast %17 : vector<16x1xf32> to vector<16x128xf32>
    %20 = arith.mulf %19, %18 : vector<16x128xf32>
    %21 = arith.addf %15, %20 : vector<16x128xf32>
    %c13_i32 = arith.constant 13 : i32
    %22 = tpu.dynamic_rotate %7 by %c13_i32 dim 1 : vector<16x256xf32>, i32 -> vector<16x256xf32>
    %23 = vector.extract_strided_slice %1 {offsets = [0, 2], sizes = [16, 1], strides = [1, 1]} : vector<16x31xf32> to vector<16x1xf32>
    %24 = vector.extract_strided_slice %22 {offsets = [0, 0], sizes = [16, 128], strides = [1, 1]} : vector<16x256xf32> to vector<16x128xf32>
    %25 = vector.broadcast %23 : vector<16x1xf32> to vector<16x128xf32>
    %26 = arith.mulf %25, %24 : vector<16x128xf32>
    %27 = arith.addf %21, %26 : vector<16x128xf32>
    %c12_i32 = arith.constant 12 : i32
    %28 = tpu.dynamic_rotate %7 by %c12_i32 dim 1 : vector<16x256xf32>, i32 -> vector<16x256xf32>
    %29 = vector.extract_strided_slice %1 {offsets = [0, 3], sizes = [16, 1], strides = [1, 1]} : vector<16x31xf32> to vector<16x1xf32>
    %30 = vector.extract_strided_slice %28 {offsets = [0, 0], sizes = [16, 128], strides = [1, 1]} : vector<16x256xf32> to vector<16x128xf32>
    %31 = vector.broadcast %29 : vector<16x1xf32> to vector<16x128xf32>
    %32 = arith.mulf %31, %30 : vector<16x128xf32>
    %33 = arith.addf %27, %32 : vector<16x128xf32>
    %c11_i32 = arith.constant 11 : i32
    %34 = tpu.dynamic_rotate %7 by %c11_i32 dim 1 : vector<16x256xf32>, i32 -> vector<16x256xf32>
    %35 = vector.extract_strided_slice %1 {offsets = [0, 4], sizes = [16, 1], strides = [1, 1]} : vector<16x31xf32> to vector<16x1xf32>
    %36 = vector.extract_strided_slice %34 {offsets = [0, 0], sizes = [16, 128], strides = [1, 1]} : vector<16x256xf32> to vector<16x128xf32>
    %37 = vector.broadcast %35 : vector<16x1xf32> to vector<16x128xf32>
    %38 = arith.mulf %37, %36 : vector<16x128xf32>
    %39 = arith.addf %33, %38 : vector<16x128xf32>
    %c10_i32 = arith.constant 10 : i32
    %40 = tpu.dynamic_rotate %7 by %c10_i32 dim 1 : vector<16x256xf32>, i32 -> vector<16x256xf32>
    %41 = vector.extract_strided_slice %1 {offsets = [0, 5], sizes = [16, 1], strides = [1, 1]} : vector<16x31xf32> to vector<16x1xf32>
    %42 = vector.extract_strided_slice %40 {offsets = [0, 0], sizes = [16, 128], strides = [1, 1]} : vector<16x256xf32> to vector<16x128xf32>
    %43 = vector.broadcast %41 : vector<16x1xf32> to vector<16x128xf32>
    %44 = arith.mulf %43, %42 : vector<16x128xf32>
    %45 = arith.addf %39, %44 : vector<16x128xf32>
    %c9_i32 = arith.constant 9 : i32
    %46 = tpu.dynamic_rotate %7 by %c9_i32 dim 1 : vector<16x256xf32>, i32 -> vector<16x256xf32>
    %47 = vector.extract_strided_slice %1 {offsets = [0, 6], sizes = [16, 1], strides = [1, 1]} : vector<16x31xf32> to vector<16x1xf32>
    %48 = vector.extract_strided_slice %46 {offsets = [0, 0], sizes = [16, 128], strides = [1, 1]} : vector<16x256xf32> to vector<16x128xf32>
    %49 = vector.broadcast %47 : vector<16x1xf32> to vector<16x128xf32>
    %50 = arith.mulf %49, %48 : vector<16x128xf32>
    %51 = arith.addf %45, %50 : vector<16x128xf32>
    %c8_i32 = arith.constant 8 : i32
    %52 = tpu.dynamic_rotate %7 by %c8_i32 dim 1 : vector<16x256xf32>, i32 -> vector<16x256xf32>
    %53 = vector.extract_strided_slice %1 {offsets = [0, 7], sizes = [16, 1], strides = [1, 1]} : vector<16x31xf32> to vector<16x1xf32>
    %54 = vector.extract_strided_slice %52 {offsets = [0, 0], sizes = [16, 128], strides = [1, 1]} : vector<16x256xf32> to vector<16x128xf32>
    %55 = vector.broadcast %53 : vector<16x1xf32> to vector<16x128xf32>
    %56 = arith.mulf %55, %54 : vector<16x128xf32>
    %57 = arith.addf %51, %56 : vector<16x128xf32>
    %c7_i32 = arith.constant 7 : i32
    %58 = tpu.dynamic_rotate %7 by %c7_i32 dim 1 : vector<16x256xf32>, i32 -> vector<16x256xf32>
    %59 = vector.extract_strided_slice %1 {offsets = [0, 8], sizes = [16, 1], strides = [1, 1]} : vector<16x31xf32> to vector<16x1xf32>
    %60 = vector.extract_strided_slice %58 {offsets = [0, 0], sizes = [16, 128], strides = [1, 1]} : vector<16x256xf32> to vector<16x128xf32>
    %61 = vector.broadcast %59 : vector<16x1xf32> to vector<16x128xf32>
    %62 = arith.mulf %61, %60 : vector<16x128xf32>
    %63 = arith.addf %57, %62 : vector<16x128xf32>
    %c6_i32 = arith.constant 6 : i32
    %64 = tpu.dynamic_rotate %7 by %c6_i32 dim 1 : vector<16x256xf32>, i32 -> vector<16x256xf32>
    %65 = vector.extract_strided_slice %1 {offsets = [0, 9], sizes = [16, 1], strides = [1, 1]} : vector<16x31xf32> to vector<16x1xf32>
    %66 = vector.extract_strided_slice %64 {offsets = [0, 0], sizes = [16, 128], strides = [1, 1]} : vector<16x256xf32> to vector<16x128xf32>
    %67 = vector.broadcast %65 : vector<16x1xf32> to vector<16x128xf32>
    %68 = arith.mulf %67, %66 : vector<16x128xf32>
    %69 = arith.addf %63, %68 : vector<16x128xf32>
    %c5_i32 = arith.constant 5 : i32
    %70 = tpu.dynamic_rotate %7 by %c5_i32 dim 1 : vector<16x256xf32>, i32 -> vector<16x256xf32>
    %71 = vector.extract_strided_slice %1 {offsets = [0, 10], sizes = [16, 1], strides = [1, 1]} : vector<16x31xf32> to vector<16x1xf32>
    %72 = vector.extract_strided_slice %70 {offsets = [0, 0], sizes = [16, 128], strides = [1, 1]} : vector<16x256xf32> to vector<16x128xf32>
    %73 = vector.broadcast %71 : vector<16x1xf32> to vector<16x128xf32>
    %74 = arith.mulf %73, %72 : vector<16x128xf32>
    %75 = arith.addf %69, %74 : vector<16x128xf32>
    %c4_i32 = arith.constant 4 : i32
    %76 = tpu.dynamic_rotate %7 by %c4_i32 dim 1 : vector<16x256xf32>, i32 -> vector<16x256xf32>
    %77 = vector.extract_strided_slice %1 {offsets = [0, 11], sizes = [16, 1], strides = [1, 1]} : vector<16x31xf32> to vector<16x1xf32>
    %78 = vector.extract_strided_slice %76 {offsets = [0, 0], sizes = [16, 128], strides = [1, 1]} : vector<16x256xf32> to vector<16x128xf32>
    %79 = vector.broadcast %77 : vector<16x1xf32> to vector<16x128xf32>
    %80 = arith.mulf %79, %78 : vector<16x128xf32>
    %81 = arith.addf %75, %80 : vector<16x128xf32>
    %c3_i32 = arith.constant 3 : i32
    %82 = tpu.dynamic_rotate %7 by %c3_i32 dim 1 : vector<16x256xf32>, i32 -> vector<16x256xf32>
    %83 = vector.extract_strided_slice %1 {offsets = [0, 12], sizes = [16, 1], strides = [1, 1]} : vector<16x31xf32> to vector<16x1xf32>
    %84 = vector.extract_strided_slice %82 {offsets = [0, 0], sizes = [16, 128], strides = [1, 1]} : vector<16x256xf32> to vector<16x128xf32>
    %85 = vector.broadcast %83 : vector<16x1xf32> to vector<16x128xf32>
    %86 = arith.mulf %85, %84 : vector<16x128xf32>
    %87 = arith.addf %81, %86 : vector<16x128xf32>
    %c2_i32 = arith.constant 2 : i32
    %88 = tpu.dynamic_rotate %7 by %c2_i32 dim 1 : vector<16x256xf32>, i32 -> vector<16x256xf32>
    %89 = vector.extract_strided_slice %1 {offsets = [0, 13], sizes = [16, 1], strides = [1, 1]} : vector<16x31xf32> to vector<16x1xf32>
    %90 = vector.extract_strided_slice %88 {offsets = [0, 0], sizes = [16, 128], strides = [1, 1]} : vector<16x256xf32> to vector<16x128xf32>
    %91 = vector.broadcast %89 : vector<16x1xf32> to vector<16x128xf32>
    %92 = arith.mulf %91, %90 : vector<16x128xf32>
    %93 = arith.addf %87, %92 : vector<16x128xf32>
    %c1_i32 = arith.constant 1 : i32
    %94 = tpu.dynamic_rotate %7 by %c1_i32 dim 1 : vector<16x256xf32>, i32 -> vector<16x256xf32>
    %95 = vector.extract_strided_slice %1 {offsets = [0, 14], sizes = [16, 1], strides = [1, 1]} : vector<16x31xf32> to vector<16x1xf32>
    %96 = vector.extract_strided_slice %94 {offsets = [0, 0], sizes = [16, 128], strides = [1, 1]} : vector<16x256xf32> to vector<16x128xf32>
    %97 = vector.broadcast %95 : vector<16x1xf32> to vector<16x128xf32>
    %98 = arith.mulf %97, %96 : vector<16x128xf32>
    %99 = arith.addf %93, %98 : vector<16x128xf32>
    %100 = vector.extract_strided_slice %1 {offsets = [0, 15], sizes = [16, 1], strides = [1, 1]} : vector<16x31xf32> to vector<16x1xf32>
    %101 = vector.extract_strided_slice %7 {offsets = [0, 0], sizes = [16, 128], strides = [1, 1]} : vector<16x256xf32> to vector<16x128xf32>
    %102 = vector.broadcast %100 : vector<16x1xf32> to vector<16x128xf32>
    %103 = arith.mulf %102, %101 : vector<16x128xf32>
    %104 = arith.addf %99, %103 : vector<16x128xf32>
    %c255_i32 = arith.constant 255 : i32
    %105 = tpu.dynamic_rotate %7 by %c255_i32 dim 1 : vector<16x256xf32>, i32 -> vector<16x256xf32>
    %106 = vector.extract_strided_slice %1 {offsets = [0, 16], sizes = [16, 1], strides = [1, 1]} : vector<16x31xf32> to vector<16x1xf32>
    %107 = vector.extract_strided_slice %105 {offsets = [0, 0], sizes = [16, 128], strides = [1, 1]} : vector<16x256xf32> to vector<16x128xf32>
    %108 = vector.broadcast %106 : vector<16x1xf32> to vector<16x128xf32>
    %109 = arith.mulf %108, %107 : vector<16x128xf32>
    %110 = arith.addf %104, %109 : vector<16x128xf32>
    %c254_i32 = arith.constant 254 : i32
    %111 = tpu.dynamic_rotate %7 by %c254_i32 dim 1 : vector<16x256xf32>, i32 -> vector<16x256xf32>
    %112 = vector.extract_strided_slice %1 {offsets = [0, 17], sizes = [16, 1], strides = [1, 1]} : vector<16x31xf32> to vector<16x1xf32>
    %113 = vector.extract_strided_slice %111 {offsets = [0, 0], sizes = [16, 128], strides = [1, 1]} : vector<16x256xf32> to vector<16x128xf32>
    %114 = vector.broadcast %112 : vector<16x1xf32> to vector<16x128xf32>
    %115 = arith.mulf %114, %113 : vector<16x128xf32>
    %116 = arith.addf %110, %115 : vector<16x128xf32>
    %c253_i32 = arith.constant 253 : i32
    %117 = tpu.dynamic_rotate %7 by %c253_i32 dim 1 : vector<16x256xf32>, i32 -> vector<16x256xf32>
    %118 = vector.extract_strided_slice %1 {offsets = [0, 18], sizes = [16, 1], strides = [1, 1]} : vector<16x31xf32> to vector<16x1xf32>
    %119 = vector.extract_strided_slice %117 {offsets = [0, 0], sizes = [16, 128], strides = [1, 1]} : vector<16x256xf32> to vector<16x128xf32>
    %120 = vector.broadcast %118 : vector<16x1xf32> to vector<16x128xf32>
    %121 = arith.mulf %120, %119 : vector<16x128xf32>
    %122 = arith.addf %116, %121 : vector<16x128xf32>
    %c252_i32 = arith.constant 252 : i32
    %123 = tpu.dynamic_rotate %7 by %c252_i32 dim 1 : vector<16x256xf32>, i32 -> vector<16x256xf32>
    %124 = vector.extract_strided_slice %1 {offsets = [0, 19], sizes = [16, 1], strides = [1, 1]} : vector<16x31xf32> to vector<16x1xf32>
    %125 = vector.extract_strided_slice %123 {offsets = [0, 0], sizes = [16, 128], strides = [1, 1]} : vector<16x256xf32> to vector<16x128xf32>
    %126 = vector.broadcast %124 : vector<16x1xf32> to vector<16x128xf32>
    %127 = arith.mulf %126, %125 : vector<16x128xf32>
    %128 = arith.addf %122, %127 : vector<16x128xf32>
    %c251_i32 = arith.constant 251 : i32
    %129 = tpu.dynamic_rotate %7 by %c251_i32 dim 1 : vector<16x256xf32>, i32 -> vector<16x256xf32>
    %130 = vector.extract_strided_slice %1 {offsets = [0, 20], sizes = [16, 1], strides = [1, 1]} : vector<16x31xf32> to vector<16x1xf32>
    %131 = vector.extract_strided_slice %129 {offsets = [0, 0], sizes = [16, 128], strides = [1, 1]} : vector<16x256xf32> to vector<16x128xf32>
    %132 = vector.broadcast %130 : vector<16x1xf32> to vector<16x128xf32>
    %133 = arith.mulf %132, %131 : vector<16x128xf32>
    %134 = arith.addf %128, %133 : vector<16x128xf32>
    %c250_i32 = arith.constant 250 : i32
    %135 = tpu.dynamic_rotate %7 by %c250_i32 dim 1 : vector<16x256xf32>, i32 -> vector<16x256xf32>
    %136 = vector.extract_strided_slice %1 {offsets = [0, 21], sizes = [16, 1], strides = [1, 1]} : vector<16x31xf32> to vector<16x1xf32>
    %137 = vector.extract_strided_slice %135 {offsets = [0, 0], sizes = [16, 128], strides = [1, 1]} : vector<16x256xf32> to vector<16x128xf32>
    %138 = vector.broadcast %136 : vector<16x1xf32> to vector<16x128xf32>
    %139 = arith.mulf %138, %137 : vector<16x128xf32>
    %140 = arith.addf %134, %139 : vector<16x128xf32>
    %c249_i32 = arith.constant 249 : i32
    %141 = tpu.dynamic_rotate %7 by %c249_i32 dim 1 : vector<16x256xf32>, i32 -> vector<16x256xf32>
    %142 = vector.extract_strided_slice %1 {offsets = [0, 22], sizes = [16, 1], strides = [1, 1]} : vector<16x31xf32> to vector<16x1xf32>
    %143 = vector.extract_strided_slice %141 {offsets = [0, 0], sizes = [16, 128], strides = [1, 1]} : vector<16x256xf32> to vector<16x128xf32>
    %144 = vector.broadcast %142 : vector<16x1xf32> to vector<16x128xf32>
    %145 = arith.mulf %144, %143 : vector<16x128xf32>
    %146 = arith.addf %140, %145 : vector<16x128xf32>
    %c248_i32 = arith.constant 248 : i32
    %147 = tpu.dynamic_rotate %7 by %c248_i32 dim 1 : vector<16x256xf32>, i32 -> vector<16x256xf32>
    %148 = vector.extract_strided_slice %1 {offsets = [0, 23], sizes = [16, 1], strides = [1, 1]} : vector<16x31xf32> to vector<16x1xf32>
    %149 = vector.extract_strided_slice %147 {offsets = [0, 0], sizes = [16, 128], strides = [1, 1]} : vector<16x256xf32> to vector<16x128xf32>
    %150 = vector.broadcast %148 : vector<16x1xf32> to vector<16x128xf32>
    %151 = arith.mulf %150, %149 : vector<16x128xf32>
    %152 = arith.addf %146, %151 : vector<16x128xf32>
    %c247_i32 = arith.constant 247 : i32
    %153 = tpu.dynamic_rotate %7 by %c247_i32 dim 1 : vector<16x256xf32>, i32 -> vector<16x256xf32>
    %154 = vector.extract_strided_slice %1 {offsets = [0, 24], sizes = [16, 1], strides = [1, 1]} : vector<16x31xf32> to vector<16x1xf32>
    %155 = vector.extract_strided_slice %153 {offsets = [0, 0], sizes = [16, 128], strides = [1, 1]} : vector<16x256xf32> to vector<16x128xf32>
    %156 = vector.broadcast %154 : vector<16x1xf32> to vector<16x128xf32>
    %157 = arith.mulf %156, %155 : vector<16x128xf32>
    %158 = arith.addf %152, %157 : vector<16x128xf32>
    %c246_i32 = arith.constant 246 : i32
    %159 = tpu.dynamic_rotate %7 by %c246_i32 dim 1 : vector<16x256xf32>, i32 -> vector<16x256xf32>
    %160 = vector.extract_strided_slice %1 {offsets = [0, 25], sizes = [16, 1], strides = [1, 1]} : vector<16x31xf32> to vector<16x1xf32>
    %161 = vector.extract_strided_slice %159 {offsets = [0, 0], sizes = [16, 128], strides = [1, 1]} : vector<16x256xf32> to vector<16x128xf32>
    %162 = vector.broadcast %160 : vector<16x1xf32> to vector<16x128xf32>
    %163 = arith.mulf %162, %161 : vector<16x128xf32>
    %164 = arith.addf %158, %163 : vector<16x128xf32>
    %c245_i32 = arith.constant 245 : i32
    %165 = tpu.dynamic_rotate %7 by %c245_i32 dim 1 : vector<16x256xf32>, i32 -> vector<16x256xf32>
    %166 = vector.extract_strided_slice %1 {offsets = [0, 26], sizes = [16, 1], strides = [1, 1]} : vector<16x31xf32> to vector<16x1xf32>
    %167 = vector.extract_strided_slice %165 {offsets = [0, 0], sizes = [16, 128], strides = [1, 1]} : vector<16x256xf32> to vector<16x128xf32>
    %168 = vector.broadcast %166 : vector<16x1xf32> to vector<16x128xf32>
    %169 = arith.mulf %168, %167 : vector<16x128xf32>
    %170 = arith.addf %164, %169 : vector<16x128xf32>
    %c244_i32 = arith.constant 244 : i32
    %171 = tpu.dynamic_rotate %7 by %c244_i32 dim 1 : vector<16x256xf32>, i32 -> vector<16x256xf32>
    %172 = vector.extract_strided_slice %1 {offsets = [0, 27], sizes = [16, 1], strides = [1, 1]} : vector<16x31xf32> to vector<16x1xf32>
    %173 = vector.extract_strided_slice %171 {offsets = [0, 0], sizes = [16, 128], strides = [1, 1]} : vector<16x256xf32> to vector<16x128xf32>
    %174 = vector.broadcast %172 : vector<16x1xf32> to vector<16x128xf32>
    %175 = arith.mulf %174, %173 : vector<16x128xf32>
    %176 = arith.addf %170, %175 : vector<16x128xf32>
    %c243_i32 = arith.constant 243 : i32
    %177 = tpu.dynamic_rotate %7 by %c243_i32 dim 1 : vector<16x256xf32>, i32 -> vector<16x256xf32>
    %178 = vector.extract_strided_slice %1 {offsets = [0, 28], sizes = [16, 1], strides = [1, 1]} : vector<16x31xf32> to vector<16x1xf32>
    %179 = vector.extract_strided_slice %177 {offsets = [0, 0], sizes = [16, 128], strides = [1, 1]} : vector<16x256xf32> to vector<16x128xf32>
    %180 = vector.broadcast %178 : vector<16x1xf32> to vector<16x128xf32>
    %181 = arith.mulf %180, %179 : vector<16x128xf32>
    %182 = arith.addf %176, %181 : vector<16x128xf32>
    %c242_i32 = arith.constant 242 : i32
    %183 = tpu.dynamic_rotate %7 by %c242_i32 dim 1 : vector<16x256xf32>, i32 -> vector<16x256xf32>
    %184 = vector.extract_strided_slice %1 {offsets = [0, 29], sizes = [16, 1], strides = [1, 1]} : vector<16x31xf32> to vector<16x1xf32>
    %185 = vector.extract_strided_slice %183 {offsets = [0, 0], sizes = [16, 128], strides = [1, 1]} : vector<16x256xf32> to vector<16x128xf32>
    %186 = vector.broadcast %184 : vector<16x1xf32> to vector<16x128xf32>
    %187 = arith.mulf %186, %185 : vector<16x128xf32>
    %188 = arith.addf %182, %187 : vector<16x128xf32>
    %c241_i32 = arith.constant 241 : i32
    %189 = tpu.dynamic_rotate %7 by %c241_i32 dim 1 : vector<16x256xf32>, i32 -> vector<16x256xf32>
    %190 = vector.extract_strided_slice %1 {offsets = [0, 30], sizes = [16, 1], strides = [1, 1]} : vector<16x31xf32> to vector<16x1xf32>
    %191 = vector.extract_strided_slice %189 {offsets = [0, 0], sizes = [16, 128], strides = [1, 1]} : vector<16x256xf32> to vector<16x128xf32>
    %192 = vector.broadcast %190 : vector<16x1xf32> to vector<16x128xf32>
    %193 = arith.mulf %192, %191 : vector<16x128xf32>
    %194 = arith.addf %188, %193 : vector<16x128xf32>
    %c0_5 = arith.constant 0 : index
    %c0_6 = arith.constant 0 : index
    %195 = vector.load %arg5[%c0_5, %c0_6] : memref<16x128xf32, #tpu.memory_space<vmem>>, vector<16x128xf32>
    tpu.vector_store %arg5[%c0_5, %c0_6], %194 {strides = array<i32>} : memref<16x128xf32, #tpu.memory_space<vmem>>, vector<16x128xf32>,
    return
  }
  func.func @transform_0(%arg0: i32, %arg1: i32) -> (i32, i32) {
    %c1_i32 = arith.constant 1 : i32
    %0 = arith.muli %arg1, %c1_i32 : i32
    %1 = arith.addi %0, %arg0 : i32
    %c0_i32 = arith.constant 0 : i32
    %c0_i32_0 = arith.constant 0 : i32
    return %1, %c0_i32 : i32, i32
  }
  func.func @transform_1(%arg0: i32, %arg1: i32) -> (i32, i32) {
    %c0_i32 = arith.constant 0 : i32
    %c0_i32_0 = arith.constant 0 : i32
    return %arg0, %c0_i32 : i32, i32
  }
  func.func @transform_2(%arg0: i32, %arg1: i32) -> (i32, i32) {
    %c0_i32 = arith.constant 0 : i32
    %c0_i32_0 = arith.constant 0 : i32
    return %arg0, %c0_i32 : i32, i32
  }
  func.func @transform_3(%arg0: i32, %arg1: i32) -> (i32, i32) {
    %c1_i32 = arith.constant 1 : i32
    %0 = arith.muli %arg1, %c1_i32 : i32
    %1 = arith.addi %0, %arg0 : i32
    %c0_i32 = arith.constant 0 : i32
    %c0_i32_0 = arith.constant 0 : i32
    return %1, %c0_i32 : i32, i32
  }
}

</mosaic_0001>

<llo_original>
// kernel: tpu_custom_call.1
$region0: #{tpu_custom_call.1}
  #allocation0 [shape = 'u32[]', space=smem, size = 0x4, offset = 0x4, fixed_abs, tag = 'smem constant byte address 0x4 - core index']
  #allocation1 [shape = 'u32[144,128]{1,0:T(1,128)}', space=vmem, size = 0x12000, scoped, tag = 'internal scratch']
  %s0 = inlined_call_operand.vmem [shape: f32[16,64], index: 0, kind: input, shape index: {}]
  %s1 = inlined_call_operand.hbm [shape: f32[16,31], index: 1, kind: input, shape index: {}]
  %s2 = inlined_call_operand.vmem [shape: f32[16,1], index: 2, kind: input, shape index: {}]
  %s3 = inlined_call_operand.hbm [shape: f32[16,64], index: 3, kind: output, shape index: {}]
  %s4 = sld [smem:[#allocation0]]
  $region64: #{tpu_custom_call.1} parent=0
    _
  %s6 = ssub.s32 1, %s4
  %s7 = scalar_select 0, %s6, %s4
  $region1: #{tpu_custom_call.1} parent=0
    #allocation2 [shape = 'u8[16384]{0}', space=vmem, size = 0x4000, scoped, tag = 'input window, operand 0, single buffered']
    #allocation3 [shape = 'u8[8192]{0}', space=vmem, size = 0x2000, scoped, tag = 'input window, operand 1, single buffered']
    #allocation4 [shape = 's32[1]{0}', space=sflag, size = 0x4, scoped, tag = 'scoped memory for tpu_custom_call.1']
    #allocation5 [shape = 's32[1]{0}', space=sflag, size = 0x4, scoped, tag = 'scoped memory for tpu_custom_call.1']
    #allocation6 [shape = 'u8[8192]{0}', space=vmem, size = 0x2000, scoped, tag = 'output window, operand 0, single buffered']
    %8 = vsyncpa [#allocation4], 0
    %9 = vsyncpa [#allocation5], 0
    // Predicated region
    $region2: #{tpu_custom_call.1} parent=1 // pred_check
      _
    $region3: #{tpu_custom_call.1} parent=1 // pred_check_branch
      %11 = sbr.rel (0) target = $region5
    $region4: #{tpu_custom_call.1} parent=1 // pred_region
      %s12 = sadd.s32 0, 0
      %s13 = smul.u32 2, %s12
      %s14 = smul.addr %s13, 8
      %s15 = scalar_lea.vmem %s0, %s14
      // Predicated region
      $region6: #{tpu_custom_call.1} parent=4 // pred_check
        _
      $region7: #{tpu_custom_call.1} parent=4 // pred_check_branch
        %17 = sbr.rel (0) target = $region9
      $region8: #{tpu_custom_call.1} parent=4 // pred_region
        // Predicated region
        $region10: #{tpu_custom_call.1} parent=8 // pred_check
          _
        $region11: #{tpu_custom_call.1} parent=8 // pred_check_branch
          %19 = sbr.rel (0) target = $region13
        $region12: #{tpu_custom_call.1} parent=8 // pred_region
          // Predicated region
          $region25: #{tpu_custom_call.1} parent=12 // pred_check
            _
          $region26: #{tpu_custom_call.1} parent=12 // pred_check_branch
            %36 = sbr.rel (0) target = $region28
          $region27: #{tpu_custom_call.1} parent=12 // pred_region
            loop: start=0, step=1, limit=1
            $region29: #{tpu_custom_call.1} parent=27 // loop_pre_header
              _
            $region30: #{tpu_custom_call.1} parent=27 // loop_header
              %s38 = sphi 0, %s42
              %p39 = scmp.ge.s32.totalorder %s38, 1
              %s43 = sphi %s15, %s15
              %s44 = sphi [#allocation2], [#allocation2]
            $region31: #{tpu_custom_call.1} parent=27 // loop_header_branch
              %41 = sbr.rel (%p39) target = $region35
            $region32: #{tpu_custom_call.1} parent=27 // loop_body
              %v45 = vld [vmem:[%s43] sm:$0xff]
              %46 = vst [vmem:[%s44] sm:$0xff] %v45
              %v47 = vld [vmem:[%s43 + $0x8] sm:$0xff]
              %48 = vst [vmem:[%s44 + $0x10] sm:$0xff] %v47
            $region33: #{tpu_custom_call.1} parent=27 // loop_footer
              %s42 = sadd.s32 1, %s38
            $region34: #{tpu_custom_call.1} parent=27 // loop_footer_branch
              %37 = sbr.rel target = $region30
            $region35: #{tpu_custom_call.1} parent=27 // loop_exit
              _
          $region28: #{tpu_custom_call.1} parent=12 // pred_fallthru
            _
          // Predicated region
          $region36: #{tpu_custom_call.1} parent=12 // pred_check
            _
          $region37: #{tpu_custom_call.1} parent=12 // pred_check_branch
            %50 = sbr.rel target = $region39
          $region38: #{tpu_custom_call.1} parent=12 // pred_region
            _
          $region39: #{tpu_custom_call.1} parent=12 // pred_fallthru
            _
        $region13: #{tpu_custom_call.1} parent=8 // pred_fallthru
          _
        // Predicated region
        $region14: #{tpu_custom_call.1} parent=8 // pred_check
          _
        $region15: #{tpu_custom_call.1} parent=8 // pred_check_branch
          %21 = sbr.rel target = $region17
        $region16: #{tpu_custom_call.1} parent=8 // pred_region
          loop: start=0, step=1, limit=1
          $region18: #{tpu_custom_call.1} parent=16 // loop_pre_header
            _
          $region19: #{tpu_custom_call.1} parent=16 // loop_header
            %s24 = sphi 0, %s28
            %p25 = scmp.ge.s32.totalorder %s24, 1
            %s29 = sphi %s15, %s15
            %s30 = sphi [#allocation2], [#allocation2]
          $region20: #{tpu_custom_call.1} parent=16 // loop_header_branch
            %27 = sbr.rel (%p25) target = $region24
          $region21: #{tpu_custom_call.1} parent=16 // loop_body
            %v31 = vld [vmem:[%s29] sm:$0xff]
            %32 = vst [vmem:[%s30] sm:$0xff] %v31
            %v33 = vld [vmem:[%s29 + $0x8] sm:$0xff]
            %34 = vst [vmem:[%s30 + $0x10] sm:$0xff] %v33
          $region22: #{tpu_custom_call.1} parent=16 // loop_footer
            %s28 = sadd.s32 1, %s24
          $region23: #{tpu_custom_call.1} parent=16 // loop_footer_branch
            %23 = sbr.rel target = $region19
          $region24: #{tpu_custom_call.1} parent=16 // loop_exit
            _
        $region17: #{tpu_custom_call.1} parent=8 // pred_fallthru
          _
      $region9: #{tpu_custom_call.1} parent=4 // pred_fallthru
        _
      %51 = vnop
    $region5: #{tpu_custom_call.1} parent=1 // pred_fallthru
      _
    // Predicated region
    $region40: #{tpu_custom_call.1} parent=1 // pred_check
      _
    $region41: #{tpu_custom_call.1} parent=1 // pred_check_branch
      %53 = sbr.rel (0) target = $region43
    $region42: #{tpu_custom_call.1} parent=1 // pred_region
      %s55 = ssub.s32 256, 256
      %56 = vsyncadd [#allocation4], %s55
      %s57 = sshll.u32 [#allocation3], 4
      %s58 = int_to_ptr.vmem [resolvable:$true] %s57
      %63 = dma.hbm_to_vmem [thread:$0]  %s1, 256, %s58, [#allocation4], 128, 128, 8
    $region43: #{tpu_custom_call.1} parent=1 // pred_fallthru
      _
    // Predicated region
    $region44: #{tpu_custom_call.1} parent=1 // pred_check
      _
    $region45: #{tpu_custom_call.1} parent=1 // pred_check_branch
      %65 = sbr.rel (0) target = $region47
    $region46: #{tpu_custom_call.1} parent=1 // pred_region
      _
    $region47: #{tpu_custom_call.1} parent=1 // pred_fallthru
      _
    // Predicated region
    $region48: #{tpu_custom_call.1} parent=1 // pred_check
      _
    $region49: #{tpu_custom_call.1} parent=1 // pred_check_branch
      %67 = sbr.rel (0) target = $region51
    $region50: #{tpu_custom_call.1} parent=1 // pred_region
      _
    $region51: #{tpu_custom_call.1} parent=1 // pred_fallthru
      _
    // Predicated region
    $region52: #{tpu_custom_call.1} parent=1 // pred_check
      _
    $region53: #{tpu_custom_call.1} parent=1 // pred_check_branch
      %69 = sbr.rel (0) target = $region55
    $region54: #{tpu_custom_call.1} parent=1 // pred_region
      %70 = dma.done [#allocation4], 256
    $region55: #{tpu_custom_call.1} parent=1 // pred_fallthru
      _
    %s71 = sadd.s32 0, 0
    %s72 = smul.u32 2, %s71
    %s73 = sadd.s32 0, 0
    %s74 = smul.u32 2, %s73
    %v75 = vld [vmem:[#allocation2] sm:$0xff]
    %v76 = vld [vmem:[#allocation2 + $0x8] sm:$0xff]
    %v77 = vld [vmem:[#allocation2 + $0x10] sm:$0xff]
    %v78 = vld [vmem:[#allocation2 + $0x18] sm:$0xff]
    %v79 = vld [vmem:[#allocation3] sm:$0xff]
    %v80 = vld [vmem:[#allocation3 + $0x8] sm:$0xff]
    %v81 = vld [vmem:[%s2] sm:$0xff]
    %v82 = vld [vmem:[%s2 + $0x8] sm:$0xff]
    %v83 = vlaneseq
    %v84 = vand.u32 %v83, 127
    %v85 = vadd.s32 %v84, 128
    %vm86 = vcmp.lt.s32.totalorder %v84, 64
    %vm87 = vcmp.lt.s32.totalorder %v85, 64
    %v88 = vsel %vm86, %v75, 0.0
    %v89 = vsel %vm87, %v76, 0.0
    %v90 = vsel %vm86, %v77, 0.0
    %v91 = vsel %vm87, %v78, 0.0
    %93 = vset.pattern.permute.xlu0 0
    %94 = vperm.xlu0 %93, %v81
    %v95 = vpop.permute.xlu0 %94
    %98 = vset.pattern.permute.xlu0 0
    %99 = vperm.xlu0 %98, %v82
    %v100 = vpop.permute.xlu0 %99
    %102 = vrot.lane.b32.xlu0 %v88, 15
    %v103 = vpop.permute.xlu0 %102
    %104 = vrot.lane.b32.xlu0 %v90, 15
    %v105 = vpop.permute.xlu0 %104
    %106 = vrot.lane.b32.xlu0 %v89, 15
    %v107 = vpop.permute.xlu0 %106
    %108 = vrot.lane.b32.xlu0 %v91, 15
    %v109 = vpop.permute.xlu0 %108
    %vm110 = vcmp.lt.s32.totalorder %v84, 15
    %v111 = vsel %vm110, %v107, %v103
    %v112 = vsel %vm110, %v109, %v105
    %114 = vset.pattern.permute.xlu0 0
    %115 = vperm.xlu0 %114, %v79
    %v116 = vpop.permute.xlu0 %115
    %119 = vset.pattern.permute.xlu0 0
    %120 = vperm.xlu0 %119, %v80
    %v121 = vpop.permute.xlu0 %120
    %v123 = vmul.f32 %v116, %v111
    %v124 = vmul.f32 %v121, %v112
    %v125 = vadd.f32 %v95, %v123
    %v126 = vadd.f32 %v100, %v124
    %127 = vrot.lane.b32.xlu0 %v88, 14
    %v128 = vpop.permute.xlu0 %127
    %129 = vrot.lane.b32.xlu0 %v90, 14
    %v130 = vpop.permute.xlu0 %129
    %131 = vrot.lane.b32.xlu0 %v89, 14
    %v132 = vpop.permute.xlu0 %131
    %133 = vrot.lane.b32.xlu0 %v91, 14
    %v134 = vpop.permute.xlu0 %133
    %vm135 = vcmp.lt.s32.totalorder %v84, 14
    %v136 = vsel %vm135, %v132, %v128
    %v137 = vsel %vm135, %v134, %v130
    %138 = vset.pattern.permute.xlu0 1
    %139 = vperm.xlu0 %138, %v79
    %v140 = vpop.permute.xlu0 %139
    %142 = vset.pattern.permute.xlu0 1
    %143 = vperm.xlu0 %142, %v80
    %v144 = vpop.permute.xlu0 %143
    %v146 = vmul.f32 %v140, %v136
    %v147 = vmul.f32 %v144, %v137
    %v148 = vadd.f32 %v125, %v146
    %v149 = vadd.f32 %v126, %v147
    %150 = vrot.lane.b32.xlu0 %v88, 13
    %v151 = vpop.permute.xlu0 %150
    %152 = vrot.lane.b32.xlu0 %v90, 13
    %v153 = vpop.permute.xlu0 %152
    %154 = vrot.lane.b32.xlu0 %v89, 13
    %v155 = vpop.permute.xlu0 %154
    %156 = vrot.lane.b32.xlu0 %v91, 13
    %v157 = vpop.permute.xlu0 %156
    %vm158 = vcmp.lt.s32.totalorder %v84, 13
    %v159 = vsel %vm158, %v155, %v151
    %v160 = vsel %vm158, %v157, %v153
    %161 = vset.pattern.permute.xlu0 2
    %162 = vperm.xlu0 %161, %v79
    %v163 = vpop.permute.xlu0 %162
    %165 = vset.pattern.permute.xlu0 2
    %166 = vperm.xlu0 %165, %v80
    %v167 = vpop.permute.xlu0 %166
    %v169 = vmul.f32 %v163, %v159
    %v170 = vmul.f32 %v167, %v160
    %v171 = vadd.f32 %v148, %v169
    %v172 = vadd.f32 %v149, %v170
    %173 = vrot.lane.b32.xlu0 %v88, 12
    %v174 = vpop.permute.xlu0 %173
    %175 = vrot.lane.b32.xlu0 %v90, 12
    %v176 = vpop.permute.xlu0 %175
    %177 = vrot.lane.b32.xlu0 %v89, 12
    %v178 = vpop.permute.xlu0 %177
    %179 = vrot.lane.b32.xlu0 %v91, 12
    %v180 = vpop.permute.xlu0 %179
    %vm181 = vcmp.lt.s32.totalorder %v84, 12
    %v182 = vsel %vm181, %v178, %v174
    %v183 = vsel %vm181, %v180, %v176
    %184 = vset.pattern.permute.xlu0 3
    %185 = vperm.xlu0 %184, %v79
    %v186 = vpop.permute.xlu0 %185
    %188 = vset.pattern.permute.xlu0 3
    %189 = vperm.xlu0 %188, %v80
    %v190 = vpop.permute.xlu0 %189
    %v192 = vmul.f32 %v186, %v182
    %v193 = vmul.f32 %v190, %v183
    %v194 = vadd.f32 %v171, %v192
    %v195 = vadd.f32 %v172, %v193
    %196 = vrot.lane.b32.xlu0 %v88, 11
    %v197 = vpop.permute.xlu0 %196
    %198 = vrot.lane.b32.xlu0 %v90, 11
    %v199 = vpop.permute.xlu0 %198
    %200 = vrot.lane.b32.xlu0 %v89, 11
    %v201 = vpop.permute.xlu0 %200
    %202 = vrot.lane.b32.xlu0 %v91, 11
    %v203 = vpop.permute.xlu0 %202
    %vm204 = vcmp.lt.s32.totalorder %v84, 11
    %v205 = vsel %vm204, %v201, %v197
    %v206 = vsel %vm204, %v203, %v199
    %207 = vset.pattern.permute.xlu0 4
    %208 = vperm.xlu0 %207, %v79
    %v209 = vpop.permute.xlu0 %208
    %211 = vset.pattern.permute.xlu0 4
    %212 = vperm.xlu0 %211, %v80
    %v213 = vpop.permute.xlu0 %212
    %v215 = vmul.f32 %v209, %v205
    %v216 = vmul.f32 %v213, %v206
    %v217 = vadd.f32 %v194, %v215
    %v218 = vadd.f32 %v195, %v216
    %219 = vrot.lane.b32.xlu0 %v88, 10
    %v220 = vpop.permute.xlu0 %219
    %221 = vrot.lane.b32.xlu0 %v90, 10
    %v222 = vpop.permute.xlu0 %221
    %223 = vrot.lane.b32.xlu0 %v89, 10
    %v224 = vpop.permute.xlu0 %223
    %225 = vrot.lane.b32.xlu0 %v91, 10
    %v226 = vpop.permute.xlu0 %225
    %vm227 = vcmp.lt.s32.totalorder %v84, 10
    %v228 = vsel %vm227, %v224, %v220
    %v229 = vsel %vm227, %v226, %v222
    %230 = vset.pattern.permute.xlu0 5
    %231 = vperm.xlu0 %230, %v79
    %v232 = vpop.permute.xlu0 %231
    %234 = vset.pattern.permute.xlu0 5
    %235 = vperm.xlu0 %234, %v80
    %v236 = vpop.permute.xlu0 %235
    %v238 = vmul.f32 %v232, %v228
    %v239 = vmul.f32 %v236, %v229
    %v240 = vadd.f32 %v217, %v238
    %v241 = vadd.f32 %v218, %v239
    %242 = vrot.lane.b32.xlu0 %v88, 9
    %v243 = vpop.permute.xlu0 %242
    %244 = vrot.lane.b32.xlu0 %v90, 9
    %v245 = vpop.permute.xlu0 %244
    %246 = vrot.lane.b32.xlu0 %v89, 9
    %v247 = vpop.permute.xlu0 %246
    %248 = vrot.lane.b32.xlu0 %v91, 9
    %v249 = vpop.permute.xlu0 %248
    %vm250 = vcmp.lt.s32.totalorder %v84, 9
    %v251 = vsel %vm250, %v247, %v243
    %v252 = vsel %vm250, %v249, %v245
    %253 = vset.pattern.permute.xlu0 6
    %254 = vperm.xlu0 %253, %v79
    %v255 = vpop.permute.xlu0 %254
    %257 = vset.pattern.permute.xlu0 6
    %258 = vperm.xlu0 %257, %v80
    %v259 = vpop.permute.xlu0 %258
    %v261 = vmul.f32 %v255, %v251
    %v262 = vmul.f32 %v259, %v252
    %v263 = vadd.f32 %v240, %v261
    %v264 = vadd.f32 %v241, %v262
    %265 = vrot.lane.b32.xlu0 %v88, 8
    %v266 = vpop.permute.xlu0 %265
    %267 = vrot.lane.b32.xlu0 %v90, 8
    %v268 = vpop.permute.xlu0 %267
    %269 = vrot.lane.b32.xlu0 %v89, 8
    %v270 = vpop.permute.xlu0 %269
    %271 = vrot.lane.b32.xlu0 %v91, 8
    %v272 = vpop.permute.xlu0 %271
    %vm273 = vcmp.lt.s32.totalorder %v84, 8
    %v274 = vsel %vm273, %v270, %v266
    %v275 = vsel %vm273, %v272, %v268
    %276 = vset.pattern.permute.xlu0 7
    %277 = vperm.xlu0 %276, %v79
    %v278 = vpop.permute.xlu0 %277
    %280 = vset.pattern.permute.xlu0 7
    %281 = vperm.xlu0 %280, %v80
    %v282 = vpop.permute.xlu0 %281
    %v284 = vmul.f32 %v278, %v274
    %v285 = vmul.f32 %v282, %v275
    %v286 = vadd.f32 %v263, %v284
    %v287 = vadd.f32 %v264, %v285
    %288 = vrot.lane.b32.xlu0 %v88, 7
    %v289 = vpop.permute.xlu0 %288
    %290 = vrot.lane.b32.xlu0 %v90, 7
    %v291 = vpop.permute.xlu0 %290
    %292 = vrot.lane.b32.xlu0 %v89, 7
    %v293 = vpop.permute.xlu0 %292
    %294 = vrot.lane.b32.xlu0 %v91, 7
    %v295 = vpop.permute.xlu0 %294
    %vm296 = vcmp.lt.s32.totalorder %v84, 7
    %v297 = vsel %vm296, %v293, %v289
    %v298 = vsel %vm296, %v295, %v291
    %299 = vset.pattern.permute.xlu0 8
    %300 = vperm.xlu0 %299, %v79
    %v301 = vpop.permute.xlu0 %300
    %303 = vset.pattern.permute.xlu0 8
    %304 = vperm.xlu0 %303, %v80
    %v305 = vpop.permute.xlu0 %304
    %v307 = vmul.f32 %v301, %v297
    %v308 = vmul.f32 %v305, %v298
    %v309 = vadd.f32 %v286, %v307
    %v310 = vadd.f32 %v287, %v308
    %311 = vrot.lane.b32.xlu0 %v88, 6
    %v312 = vpop.permute.xlu0 %311
    %313 = vrot.lane.b32.xlu0 %v90, 6
    %v314 = vpop.permute.xlu0 %313
    %315 = vrot.lane.b32.xlu0 %v89, 6
    %v316 = vpop.permute.xlu0 %315
    %317 = vrot.lane.b32.xlu0 %v91, 6
    %v318 = vpop.permute.xlu0 %317
    %vm319 = vcmp.lt.s32.totalorder %v84, 6
    %v320 = vsel %vm319, %v316, %v312
    %v321 = vsel %vm319, %v318, %v314
    %322 = vset.pattern.permute.xlu0 9
    %323 = vperm.xlu0 %322, %v79
    %v324 = vpop.permute.xlu0 %323
    %326 = vset.pattern.permute.xlu0 9
    %327 = vperm.xlu0 %326, %v80
    %v328 = vpop.permute.xlu0 %327
    %v330 = vmul.f32 %v324, %v320
    %v331 = vmul.f32 %v328, %v321
    %v332 = vadd.f32 %v309, %v330
    %v333 = vadd.f32 %v310, %v331
    %334 = vrot.lane.b32.xlu0 %v88, 5
    %v335 = vpop.permute.xlu0 %334
    %336 = vrot.lane.b32.xlu0 %v90, 5
    %v337 = vpop.permute.xlu0 %336
    %338 = vrot.lane.b32.xlu0 %v89, 5
    %v339 = vpop.permute.xlu0 %338
    %340 = vrot.lane.b32.xlu0 %v91, 5
    %v341 = vpop.permute.xlu0 %340
    %vm342 = vcmp.lt.s32.totalorder %v84, 5
    %v343 = vsel %vm342, %v339, %v335
    %v344 = vsel %vm342, %v341, %v337
    %345 = vset.pattern.permute.xlu0 10
    %346 = vperm.xlu0 %345, %v79
    %v347 = vpop.permute.xlu0 %346
    %349 = vset.pattern.permute.xlu0 10
    %350 = vperm.xlu0 %349, %v80
    %v351 = vpop.permute.xlu0 %350
    %v353 = vmul.f32 %v347, %v343
    %v354 = vmul.f32 %v351, %v344
    %v355 = vadd.f32 %v332, %v353
    %v356 = vadd.f32 %v333, %v354
    %357 = vrot.lane.b32.xlu0 %v88, 4
    %v358 = vpop.permute.xlu0 %357
    %359 = vrot.lane.b32.xlu0 %v90, 4
    %v360 = vpop.permute.xlu0 %359
    %361 = vrot.lane.b32.xlu0 %v89, 4
    %v362 = vpop.permute.xlu0 %361
    %363 = vrot.lane.b32.xlu0 %v91, 4
    %v364 = vpop.permute.xlu0 %363
    %vm365 = vcmp.lt.s32.totalorder %v84, 4
    %v366 = vsel %vm365, %v362, %v358
    %v367 = vsel %vm365, %v364, %v360
    %368 = vset.pattern.permute.xlu0 11
    %369 = vperm.xlu0 %368, %v79
    %v370 = vpop.permute.xlu0 %369
    %372 = vset.pattern.permute.xlu0 11
    %373 = vperm.xlu0 %372, %v80
    %v374 = vpop.permute.xlu0 %373
    %v376 = vmul.f32 %v370, %v366
    %v377 = vmul.f32 %v374, %v367
    %v378 = vadd.f32 %v355, %v376
    %v379 = vadd.f32 %v356, %v377
    %380 = vrot.lane.b32.xlu0 %v88, 3
    %v381 = vpop.permute.xlu0 %380
    %382 = vrot.lane.b32.xlu0 %v90, 3
    %v383 = vpop.permute.xlu0 %382
    %384 = vrot.lane.b32.xlu0 %v89, 3
    %v385 = vpop.permute.xlu0 %384
    %386 = vrot.lane.b32.xlu0 %v91, 3
    %v387 = vpop.permute.xlu0 %386
    %vm388 = vcmp.lt.s32.totalorder %v84, 3
    %v389 = vsel %vm388, %v385, %v381
    %v390 = vsel %vm388, %v387, %v383
    %391 = vset.pattern.permute.xlu0 12
    %392 = vperm.xlu0 %391, %v79
    %v393 = vpop.permute.xlu0 %392
    %395 = vset.pattern.permute.xlu0 12
    %396 = vperm.xlu0 %395, %v80
    %v397 = vpop.permute.xlu0 %396
    %v399 = vmul.f32 %v393, %v389
    %v400 = vmul.f32 %v397, %v390
    %v401 = vadd.f32 %v378, %v399
    %v402 = vadd.f32 %v379, %v400
    %403 = vrot.lane.b32.xlu0 %v88, 2
    %v404 = vpop.permute.xlu0 %403
    %405 = vrot.lane.b32.xlu0 %v90, 2
    %v406 = vpop.permute.xlu0 %405
    %407 = vrot.lane.b32.xlu0 %v89, 2
    %v408 = vpop.permute.xlu0 %407
    %409 = vrot.lane.b32.xlu0 %v91, 2
    %v410 = vpop.permute.xlu0 %409
    %vm411 = vcmp.lt.s32.totalorder %v84, 2
    %v412 = vsel %vm411, %v408, %v404
    %v413 = vsel %vm411, %v410, %v406
    %414 = vset.pattern.permute.xlu0 13
    %415 = vperm.xlu0 %414, %v79
    %v416 = vpop.permute.xlu0 %415
    %418 = vset.pattern.permute.xlu0 13
    %419 = vperm.xlu0 %418, %v80
    %v420 = vpop.permute.xlu0 %419
    %v422 = vmul.f32 %v416, %v412
    %v423 = vmul.f32 %v420, %v413
    %v424 = vadd.f32 %v401, %v422
    %v425 = vadd.f32 %v402, %v423
    %426 = vrot.lane.b32.xlu0 %v88, 1
    %v427 = vpop.permute.xlu0 %426
    %428 = vrot.lane.b32.xlu0 %v90, 1
    %v429 = vpop.permute.xlu0 %428
    %430 = vrot.lane.b32.xlu0 %v89, 1
    %v431 = vpop.permute.xlu0 %430
    %432 = vrot.lane.b32.xlu0 %v91, 1
    %v433 = vpop.permute.xlu0 %432
    %vm434 = vcmp.lt.s32.totalorder %v84, 1
    %v435 = vsel %vm434, %v431, %v427
    %v436 = vsel %vm434, %v433, %v429
    %437 = vset.pattern.permute.xlu0 14
    %438 = vperm.xlu0 %437, %v79
    %v439 = vpop.permute.xlu0 %438
    %441 = vset.pattern.permute.xlu0 14
    %442 = vperm.xlu0 %441, %v80
    %v443 = vpop.permute.xlu0 %442
    %v445 = vmul.f32 %v439, %v435
    %v446 = vmul.f32 %v443, %v436
    %v447 = vadd.f32 %v424, %v445
    %v448 = vadd.f32 %v425, %v446
    %449 = vset.pattern.permute.xlu0 15
    %450 = vperm.xlu0 %449, %v79
    %v451 = vpop.permute.xlu0 %450
    %453 = vset.pattern.permute.xlu0 15
    %454 = vperm.xlu0 %453, %v80
    %v455 = vpop.permute.xlu0 %454
    %v457 = vmul.f32 %v451, %v88
    %v458 = vmul.f32 %v455, %v90
    %v459 = vadd.f32 %v447, %v457
    %v460 = vadd.f32 %v448, %v458
    %461 = vrot.lane.b32.xlu0 %v88, 127
    %v462 = vpop.permute.xlu0 %461
    %463 = vrot.lane.b32.xlu0 %v90, 127
    %v464 = vpop.permute.xlu0 %463
    %465 = vrot.lane.b32.xlu0 %v89, 127
    %v466 = vpop.permute.xlu0 %465
    %467 = vrot.lane.b32.xlu0 %v91, 127
    %v468 = vpop.permute.xlu0 %467
    %vm469 = vcmp.lt.s32.totalorder %v84, 127
    %v470 = vsel %vm469, %v462, %v466
    %v471 = vsel %vm469, %v464, %v468
    %472 = vset.pattern.permute.xlu0 16
    %473 = vperm.xlu0 %472, %v79
    %v474 = vpop.permute.xlu0 %473
    %476 = vset.pattern.permute.xlu0 16
    %477 = vperm.xlu0 %476, %v80
    %v478 = vpop.permute.xlu0 %477
    %v480 = vmul.f32 %v474, %v470
    %v481 = vmul.f32 %v478, %v471
    %v482 = vadd.f32 %v459, %v480
    %v483 = vadd.f32 %v460, %v481
    %484 = vrot.lane.b32.xlu0 %v88, 126
    %v485 = vpop.permute.xlu0 %484
    %486 = vrot.lane.b32.xlu0 %v90, 126
    %v487 = vpop.permute.xlu0 %486
    %488 = vrot.lane.b32.xlu0 %v89, 126
    %v489 = vpop.permute.xlu0 %488
    %490 = vrot.lane.b32.xlu0 %v91, 126
    %v491 = vpop.permute.xlu0 %490
    %vm492 = vcmp.lt.s32.totalorder %v84, 126
    %v493 = vsel %vm492, %v485, %v489
    %v494 = vsel %vm492, %v487, %v491
    %495 = vset.pattern.permute.xlu0 17
    %496 = vperm.xlu0 %495, %v79
    %v497 = vpop.permute.xlu0 %496
    %499 = vset.pattern.permute.xlu0 17
    %500 = vperm.xlu0 %499, %v80
    %v501 = vpop.permute.xlu0 %500
    %v503 = vmul.f32 %v497, %v493
    %v504 = vmul.f32 %v501, %v494
    %v505 = vadd.f32 %v482, %v503
    %v506 = vadd.f32 %v483, %v504
    %507 = vrot.lane.b32.xlu0 %v88, 125
    %v508 = vpop.permute.xlu0 %507
    %509 = vrot.lane.b32.xlu0 %v90, 125
    %v510 = vpop.permute.xlu0 %509
    %511 = vrot.lane.b32.xlu0 %v89, 125
    %v512 = vpop.permute.xlu0 %511
    %513 = vrot.lane.b32.xlu0 %v91, 125
    %v514 = vpop.permute.xlu0 %513
    %vm515 = vcmp.lt.s32.totalorder %v84, 125
    %v516 = vsel %vm515, %v508, %v512
    %v517 = vsel %vm515, %v510, %v514
    %518 = vset.pattern.permute.xlu0 18
    %519 = vperm.xlu0 %518, %v79
    %v520 = vpop.permute.xlu0 %519
    %522 = vset.pattern.permute.xlu0 18
    %523 = vperm.xlu0 %522, %v80
    %v524 = vpop.permute.xlu0 %523
    %v526 = vmul.f32 %v520, %v516
    %v527 = vmul.f32 %v524, %v517
    %v528 = vadd.f32 %v505, %v526
    %v529 = vadd.f32 %v506, %v527
    %530 = vrot.lane.b32.xlu0 %v88, 124
    %v531 = vpop.permute.xlu0 %530
    %532 = vrot.lane.b32.xlu0 %v90, 124
    %v533 = vpop.permute.xlu0 %532
    %534 = vrot.lane.b32.xlu0 %v89, 124
    %v535 = vpop.permute.xlu0 %534
    %536 = vrot.lane.b32.xlu0 %v91, 124
    %v537 = vpop.permute.xlu0 %536
    %vm538 = vcmp.lt.s32.totalorder %v84, 124
    %v539 = vsel %vm538, %v531, %v535
    %v540 = vsel %vm538, %v533, %v537
    %541 = vset.pattern.permute.xlu0 19
    %542 = vperm.xlu0 %541, %v79
    %v543 = vpop.permute.xlu0 %542
    %545 = vset.pattern.permute.xlu0 19
    %546 = vperm.xlu0 %545, %v80
    %v547 = vpop.permute.xlu0 %546
    %v549 = vmul.f32 %v543, %v539
    %v550 = vmul.f32 %v547, %v540
    %v551 = vadd.f32 %v528, %v549
    %v552 = vadd.f32 %v529, %v550
    %553 = vrot.lane.b32.xlu0 %v88, 123
    %v554 = vpop.permute.xlu0 %553
    %555 = vrot.lane.b32.xlu0 %v90, 123
    %v556 = vpop.permute.xlu0 %555
    %557 = vrot.lane.b32.xlu0 %v89, 123
    %v558 = vpop.permute.xlu0 %557
    %559 = vrot.lane.b32.xlu0 %v91, 123
    %v560 = vpop.permute.xlu0 %559
    %vm561 = vcmp.lt.s32.totalorder %v84, 123
    %v562 = vsel %vm561, %v554, %v558
    %v563 = vsel %vm561, %v556, %v560
    %564 = vset.pattern.permute.xlu0 20
    %565 = vperm.xlu0 %564, %v79
    %v566 = vpop.permute.xlu0 %565
    %568 = vset.pattern.permute.xlu0 20
    %569 = vperm.xlu0 %568, %v80
    %v570 = vpop.permute.xlu0 %569
    %v572 = vmul.f32 %v566, %v562
    %v573 = vmul.f32 %v570, %v563
    %v574 = vadd.f32 %v551, %v572
    %v575 = vadd.f32 %v552, %v573
    %576 = vrot.lane.b32.xlu0 %v88, 122
    %v577 = vpop.permute.xlu0 %576
    %578 = vrot.lane.b32.xlu0 %v90, 122
    %v579 = vpop.permute.xlu0 %578
    %580 = vrot.lane.b32.xlu0 %v89, 122
    %v581 = vpop.permute.xlu0 %580
    %582 = vrot.lane.b32.xlu0 %v91, 122
    %v583 = vpop.permute.xlu0 %582
    %vm584 = vcmp.lt.s32.totalorder %v84, 122
    %v585 = vsel %vm584, %v577, %v581
    %v586 = vsel %vm584, %v579, %v583
    %587 = vset.pattern.permute.xlu0 21
    %588 = vperm.xlu0 %587, %v79
    %v589 = vpop.permute.xlu0 %588
    %591 = vset.pattern.permute.xlu0 21
    %592 = vperm.xlu0 %591, %v80
    %v593 = vpop.permute.xlu0 %592
    %v595 = vmul.f32 %v589, %v585
    %v596 = vmul.f32 %v593, %v586
    %v597 = vadd.f32 %v574, %v595
    %v598 = vadd.f32 %v575, %v596
    %599 = vrot.lane.b32.xlu0 %v88, 121
    %v600 = vpop.permute.xlu0 %599
    %601 = vrot.lane.b32.xlu0 %v90, 121
    %v602 = vpop.permute.xlu0 %601
    %603 = vrot.lane.b32.xlu0 %v89, 121
    %v604 = vpop.permute.xlu0 %603
    %605 = vrot.lane.b32.xlu0 %v91, 121
    %v606 = vpop.permute.xlu0 %605
    %vm607 = vcmp.lt.s32.totalorder %v84, 121
    %v608 = vsel %vm607, %v600, %v604
    %v609 = vsel %vm607, %v602, %v606
    %610 = vset.pattern.permute.xlu0 22
    %611 = vperm.xlu0 %610, %v79
    %v612 = vpop.permute.xlu0 %611
    %614 = vset.pattern.permute.xlu0 22
    %615 = vperm.xlu0 %614, %v80
    %v616 = vpop.permute.xlu0 %615
    %v618 = vmul.f32 %v612, %v608
    %v619 = vmul.f32 %v616, %v609
    %v620 = vadd.f32 %v597, %v618
    %v621 = vadd.f32 %v598, %v619
    %622 = vrot.lane.b32.xlu0 %v88, 120
    %v623 = vpop.permute.xlu0 %622
    %624 = vrot.lane.b32.xlu0 %v90, 120
    %v625 = vpop.permute.xlu0 %624
    %626 = vrot.lane.b32.xlu0 %v89, 120
    %v627 = vpop.permute.xlu0 %626
    %628 = vrot.lane.b32.xlu0 %v91, 120
    %v629 = vpop.permute.xlu0 %628
    %vm630 = vcmp.lt.s32.totalorder %v84, 120
    %v631 = vsel %vm630, %v623, %v627
    %v632 = vsel %vm630, %v625, %v629
    %633 = vset.pattern.permute.xlu0 23
    %634 = vperm.xlu0 %633, %v79
    %v635 = vpop.permute.xlu0 %634
    %637 = vset.pattern.permute.xlu0 23
    %638 = vperm.xlu0 %637, %v80
    %v639 = vpop.permute.xlu0 %638
    %v641 = vmul.f32 %v635, %v631
    %v642 = vmul.f32 %v639, %v632
    %v643 = vadd.f32 %v620, %v641
    %v644 = vadd.f32 %v621, %v642
    %645 = vrot.lane.b32.xlu0 %v88, 119
    %v646 = vpop.permute.xlu0 %645
    %647 = vrot.lane.b32.xlu0 %v90, 119
    %v648 = vpop.permute.xlu0 %647
    %649 = vrot.lane.b32.xlu0 %v89, 119
    %v650 = vpop.permute.xlu0 %649
    %651 = vrot.lane.b32.xlu0 %v91, 119
    %v652 = vpop.permute.xlu0 %651
    %vm653 = vcmp.lt.s32.totalorder %v84, 119
    %v654 = vsel %vm653, %v646, %v650
    %v655 = vsel %vm653, %v648, %v652
    %656 = vset.pattern.permute.xlu0 24
    %657 = vperm.xlu0 %656, %v79
    %v658 = vpop.permute.xlu0 %657
    %660 = vset.pattern.permute.xlu0 24
    %661 = vperm.xlu0 %660, %v80
    %v662 = vpop.permute.xlu0 %661
    %v664 = vmul.f32 %v658, %v654
    %v665 = vmul.f32 %v662, %v655
    %v666 = vadd.f32 %v643, %v664
    %v667 = vadd.f32 %v644, %v665
    %668 = vrot.lane.b32.xlu0 %v88, 118
    %v669 = vpop.permute.xlu0 %668
    %670 = vrot.lane.b32.xlu0 %v90, 118
    %v671 = vpop.permute.xlu0 %670
    %672 = vrot.lane.b32.xlu0 %v89, 118
    %v673 = vpop.permute.xlu0 %672
    %674 = vrot.lane.b32.xlu0 %v91, 118
    %v675 = vpop.permute.xlu0 %674
    %vm676 = vcmp.lt.s32.totalorder %v84, 118
    %v677 = vsel %vm676, %v669, %v673
    %v678 = vsel %vm676, %v671, %v675
    %679 = vset.pattern.permute.xlu0 25
    %680 = vperm.xlu0 %679, %v79
    %v681 = vpop.permute.xlu0 %680
    %683 = vset.pattern.permute.xlu0 25
    %684 = vperm.xlu0 %683, %v80
    %v685 = vpop.permute.xlu0 %684
    %v687 = vmul.f32 %v681, %v677
    %v688 = vmul.f32 %v685, %v678
    %v689 = vadd.f32 %v666, %v687
    %v690 = vadd.f32 %v667, %v688
    %691 = vrot.lane.b32.xlu0 %v88, 117
    %v692 = vpop.permute.xlu0 %691
    %693 = vrot.lane.b32.xlu0 %v90, 117
    %v694 = vpop.permute.xlu0 %693
    %695 = vrot.lane.b32.xlu0 %v89, 117
    %v696 = vpop.permute.xlu0 %695
    %697 = vrot.lane.b32.xlu0 %v91, 117
    %v698 = vpop.permute.xlu0 %697
    %vm699 = vcmp.lt.s32.totalorder %v84, 117
    %v700 = vsel %vm699, %v692, %v696
    %v701 = vsel %vm699, %v694, %v698
    %702 = vset.pattern.permute.xlu0 26
    %703 = vperm.xlu0 %702, %v79
    %v704 = vpop.permute.xlu0 %703
    %706 = vset.pattern.permute.xlu0 26
    %707 = vperm.xlu0 %706, %v80
    %v708 = vpop.permute.xlu0 %707
    %v710 = vmul.f32 %v704, %v700
    %v711 = vmul.f32 %v708, %v701
    %v712 = vadd.f32 %v689, %v710
    %v713 = vadd.f32 %v690, %v711
    %714 = vrot.lane.b32.xlu0 %v88, 116
    %v715 = vpop.permute.xlu0 %714
    %716 = vrot.lane.b32.xlu0 %v90, 116
    %v717 = vpop.permute.xlu0 %716
    %718 = vrot.lane.b32.xlu0 %v89, 116
    %v719 = vpop.permute.xlu0 %718
    %720 = vrot.lane.b32.xlu0 %v91, 116
    %v721 = vpop.permute.xlu0 %720
    %vm722 = vcmp.lt.s32.totalorder %v84, 116
    %v723 = vsel %vm722, %v715, %v719
    %v724 = vsel %vm722, %v717, %v721
    %725 = vset.pattern.permute.xlu0 27
    %726 = vperm.xlu0 %725, %v79
    %v727 = vpop.permute.xlu0 %726
    %729 = vset.pattern.permute.xlu0 27
    %730 = vperm.xlu0 %729, %v80
    %v731 = vpop.permute.xlu0 %730
    %v733 = vmul.f32 %v727, %v723
    %v734 = vmul.f32 %v731, %v724
    %v735 = vadd.f32 %v712, %v733
    %v736 = vadd.f32 %v713, %v734
    %737 = vrot.lane.b32.xlu0 %v88, 115
    %v738 = vpop.permute.xlu0 %737
    %739 = vrot.lane.b32.xlu0 %v90, 115
    %v740 = vpop.permute.xlu0 %739
    %741 = vrot.lane.b32.xlu0 %v89, 115
    %v742 = vpop.permute.xlu0 %741
    %743 = vrot.lane.b32.xlu0 %v91, 115
    %v744 = vpop.permute.xlu0 %743
    %vm745 = vcmp.lt.s32.totalorder %v84, 115
    %v746 = vsel %vm745, %v738, %v742
    %v747 = vsel %vm745, %v740, %v744
    %748 = vset.pattern.permute.xlu0 28
    %749 = vperm.xlu0 %748, %v79
    %v750 = vpop.permute.xlu0 %749
    %752 = vset.pattern.permute.xlu0 28
    %753 = vperm.xlu0 %752, %v80
    %v754 = vpop.permute.xlu0 %753
    %v756 = vmul.f32 %v750, %v746
    %v757 = vmul.f32 %v754, %v747
    %v758 = vadd.f32 %v735, %v756
    %v759 = vadd.f32 %v736, %v757
    %760 = vrot.lane.b32.xlu0 %v88, 114
    %v761 = vpop.permute.xlu0 %760
    %762 = vrot.lane.b32.xlu0 %v90, 114
    %v763 = vpop.permute.xlu0 %762
    %764 = vrot.lane.b32.xlu0 %v89, 114
    %v765 = vpop.permute.xlu0 %764
    %766 = vrot.lane.b32.xlu0 %v91, 114
    %v767 = vpop.permute.xlu0 %766
    %vm768 = vcmp.lt.s32.totalorder %v84, 114
    %v769 = vsel %vm768, %v761, %v765
    %v770 = vsel %vm768, %v763, %v767
    %771 = vset.pattern.permute.xlu0 29
    %772 = vperm.xlu0 %771, %v79
    %v773 = vpop.permute.xlu0 %772
    %775 = vset.pattern.permute.xlu0 29
    %776 = vperm.xlu0 %775, %v80
    %v777 = vpop.permute.xlu0 %776
    %v779 = vmul.f32 %v773, %v769
    %v780 = vmul.f32 %v777, %v770
    %v781 = vadd.f32 %v758, %v779
    %v782 = vadd.f32 %v759, %v780
    %783 = vrot.lane.b32.xlu0 %v88, 113
    %v784 = vpop.permute.xlu0 %783
    %785 = vrot.lane.b32.xlu0 %v90, 113
    %v786 = vpop.permute.xlu0 %785
    %787 = vrot.lane.b32.xlu0 %v89, 113
    %v788 = vpop.permute.xlu0 %787
    %789 = vrot.lane.b32.xlu0 %v91, 113
    %v790 = vpop.permute.xlu0 %789
    %vm791 = vcmp.lt.s32.totalorder %v84, 113
    %v792 = vsel %vm791, %v784, %v788
    %v793 = vsel %vm791, %v786, %v790
    %794 = vset.pattern.permute.xlu0 30
    %795 = vperm.xlu0 %794, %v79
    %v796 = vpop.permute.xlu0 %795
    %798 = vset.pattern.permute.xlu0 30
    %799 = vperm.xlu0 %798, %v80
    %v800 = vpop.permute.xlu0 %799
    %v802 = vmul.f32 %v796, %v792
    %v803 = vmul.f32 %v800, %v793
    %v804 = vadd.f32 %v781, %v802
    %v805 = vadd.f32 %v782, %v803
    %806 = vst [vmem:[#allocation6] sm:$0xff] %v804
    %807 = vst [vmem:[#allocation6 + $0x8] sm:$0xff] %v805
    // Predicated region
    $region56: #{tpu_custom_call.1} parent=1 // pred_check
      _
    $region57: #{tpu_custom_call.1} parent=1 // pred_check_branch
      %809 = sbr.rel (0) target = $region59
    $region58: #{tpu_custom_call.1} parent=1 // pred_region
      %s810 = sadd.s32 0, 0
      %s811 = smul.u32 2, %s810
      %s813 = ssub.s32 256, 256
      %814 = vsyncadd [#allocation5], %s813
      %s815 = smul.addr %s811, 128
      %s816 = scalar_lea.hbm %s3, %s815
      %s817 = sshll.u32 [#allocation6], 4
      %s818 = int_to_ptr.vmem [resolvable:$true] %s817
      %823 = dma.vmem_to_hbm [thread:$0]  %s818, 256, %s816, [#allocation5], 128, 128, 8
    $region59: #{tpu_custom_call.1} parent=1 // pred_fallthru
      _
    // Predicated region
    $region60: #{tpu_custom_call.1} parent=1 // pred_check
      _
    $region61: #{tpu_custom_call.1} parent=1 // pred_check_branch
      %825 = sbr.rel (0) target = $region63
    $region62: #{tpu_custom_call.1} parent=1 // pred_region
      %826 = dma.done [#allocation5], 256
    $region63: #{tpu_custom_call.1} parent=1 // pred_fallthru
      _
    %827 = vsyncpa [#allocation4], 1
    %828 = vsyncpa [#allocation5], 1

</llo_original>
